<compile_context>
chip_gen: v6e
topology: v6e:2x2x1
jax: 0.10.0
libtpu: 0.0.40
codegen_flags: <defaults>
</compile_context>

<pallas_src>
import jax
import jax.numpy as jnp
from jax.experimental import pallas as pl
from jax.experimental.pallas import tpu as pltpu


def _round_up(a, b):
    return -(-a // b) * b


def _conv1x1_kernel(w_ref, b_ref, x_ref, o_ref):
    # w_ref: VMEM (C, 1) f32; b_ref: SMEM (1,) f32
    # x_ref: VMEM (TN, C, TP); o_ref: VMEM (TN, 1, TP) f32
    x = x_ref[...].astype(jnp.float32)
    w = w_ref[...][None, :, :]                     # (1, C, 1)
    prod = x * w                                   # VPU broadcast multiply
    acc = jnp.sum(prod, axis=1, keepdims=True)     # XLU sublane reduce -> (TN, 1, TP)
    o_ref[...] = (acc + b_ref[0]).astype(o_ref.dtype)


def fully_conv_layer_forward(x, weight, bias, *, batch_block_threshold_bytes=1 << 20):
    """x: (N, C, H, W); weight: (1, C, 1, 1); bias: (1,). Returns (N, 1, H, W) f32."""
    N, C, H, W = x.shape
    HW = H * W

    x3 = x.reshape(N, C, HW)                       # free reshape, no extra HBM pass
    w = weight.reshape(C, 1).astype(jnp.float32)
    b = bias.reshape(1).astype(jnp.float32)

    itemsize = jnp.dtype(x3.dtype).itemsize
    sublane_pack = max(8, 32 // max(itemsize, 1))  # 8 (f32), 16 (bf16), 32 (int8)
    c_pad = _round_up(C, sublane_pack)             # real sublane footprint of the C dim
    hw_lane = _round_up(HW, 128)                   # real lane footprint of the HW dim

    # ---- per-chip block-size / VMEM targets --------------------------------
    try:
        vmem_cap = int(pltpu.get_tpu_info().vmem_capacity_bytes)
    except Exception:
        vmem_cap = 64 << 20                        # conservative (v7x) fallback
    if vmem_cap >= (100 << 20):                    # v5e / v6e: 128 MiB physical VMEM
        target_block_bytes = 16 << 20
        vmem_cap_limit = 48 << 20
    else:                                          # v7x: 64 MiB physical VMEM
        target_block_bytes = 10 << 20
        vmem_cap_limit = 36 << 20

    # Bytes per pixel column: padded input column + padded f32 output column
    # (the 1-row output tile pads to 8 sublanes).
    in_col_bytes = c_pad * itemsize
    out_col_bytes = 8 * 4
    col_bytes = in_col_bytes + out_col_bytes
    per_sample_bytes = col_bytes * hw_lane

    if per_sample_bytes <= batch_block_threshold_bytes:
        # ---- Path A: small feature maps -> block over the batch axis. -------
        tn = max(1, min(N, target_block_bytes // per_sample_bytes))
        if N >= 8 and N // tn < 4:                 # keep a few steps for pipelining
            tn = max(1, N // 8)
        grid = (pl.cdiv(N, tn),)
        in_specs = [
            pl.BlockSpec((C, 1), lambda i: (0, 0)),
            pl.BlockSpec(memory_space=pltpu.MemorySpace.SMEM),
            pl.BlockSpec((tn, C, HW), lambda i: (i, 0, 0)),
        ]
        out_spec = pl.BlockSpec((tn, 1, HW), lambda i: (i, 0, 0))
        dim_sem = ("parallel",)
        block_bytes = tn * per_sample_bytes
    else:
        # ---- Path B: large feature maps -> block over the pixel axis. -------
        tp = max(128, (target_block_bytes // col_bytes) // 128 * 128)
        if tp >= HW:
            tp = HW                                # full-extent block
        # Guarantee >= ~8 grid steps: overlapped DMA pipeline + both v7x TCs.
        if N * pl.cdiv(HW, tp) < 8 and HW > 128:
            per_sample_steps = pl.cdiv(8, N)
            tp_split = _round_up(pl.cdiv(HW, per_sample_steps), 128)
            tp = min(tp, max(128, tp_split))
            if tp > HW:
                tp = HW
        grid = (N, pl.cdiv(HW, tp))
        in_specs = [
            pl.BlockSpec((C, 1), lambda n, i: (0, 0)),
            pl.BlockSpec(memory_space=pltpu.MemorySpace.SMEM),
            pl.BlockSpec((1, C, tp), lambda n, i: (n, 0, i)),
        ]
        out_spec = pl.BlockSpec((1, 1, tp), lambda n, i: (n, 0, i))
        dim_sem = ("parallel", "parallel")
        block_bytes = _round_up(tp, 128) * col_bytes

    # Explicit VMEM budget: double-buffered in+out blocks + weight + slack.
    w_bytes = c_pad * 128 * 4
    vmem_needed = 2 * block_bytes + w_bytes + (2 << 20)
    vmem_limit = int(min(max(vmem_needed, 4 << 20), vmem_cap_limit))

    cost = pl.CostEstimate(
        flops=2 * N * C * HW,
        transcendentals=0,
        bytes_accessed=N * C * HW * itemsize + N * HW * 4 + C * 4 + 4,
    )

    out = pl.pallas_call(
        _conv1x1_kernel,
        out_shape=jax.ShapeDtypeStruct((N, 1, HW), jnp.float32),
        grid_spec=pl.GridSpec(
            grid=grid,
            in_specs=in_specs,
            out_specs=out_spec,
        ),
        compiler_params=pltpu.CompilerParams(
            dimension_semantics=dim_sem,
            vmem_limit_bytes=vmem_limit,
        ),
        cost_estimate=cost,
    )(w, b, x3)

    return out.reshape(N, 1, H, W)


def _reference(x, weight, bias):
    C = x.shape[1]
    ref = jnp.einsum("nchw,c->nhw", x.astype(jnp.float32), weight.reshape(C).astype(jnp.float32))
    return (ref + bias[0])[:, None, :, :]


if __name__ == "__main__":
    key = jax.random.PRNGKey(0)

    # Test 1: small C, small map (batch-blocked path).
    k_x, k_w, k_b, key = jax.random.split(key, 4)
    N, C, H, W = 2, 4, 16, 16
    x = jax.random.normal(k_x, (N, C, H, W), dtype=jnp.float32)
    bound = 1.0 / (C ** 0.5)
    weight = jax.random.uniform(k_w, (1, C, 1, 1), jnp.float32, -bound, bound)
    bias = jax.random.uniform(k_b, (1,), jnp.float32, -bound, bound)

    out = jax.block_until_ready(fully_conv_layer_forward(x, weight, bias))
    ref = _reference(x, weight, bias)
    assert out.shape == (N, 1, H, W), out.shape
    assert jnp.allclose(out, ref, atol=1e-5, rtol=1e-5), "mismatch vs reference (C=4)"

    # Test 2: larger C, sub-128-lane map (batch-blocked path, masked lanes).
    k_x, k_w, k_b, key = jax.random.split(key, 4)
    N2, C2, H2, W2 = 2, 32, 8, 8
    x2 = jax.random.normal(k_x, (N2, C2, H2, W2), dtype=jnp.float32)
    bound2 = 1.0 / (C2 ** 0.5)
    weight2 = jax.random.uniform(k_w, (1, C2, 1, 1), jnp.float32, -bound2, bound2)
    bias2 = jax.random.uniform(k_b, (1,), jnp.float32, -bound2, bound2)

    out2 = jax.block_until_ready(fully_conv_layer_forward(x2, weight2, bias2))
    ref2 = _reference(x2, weight2, bias2)
    assert out2.shape == (N2, 1, H2, W2), out2.shape
    assert jnp.allclose(out2, ref2, atol=1e-5, rtol=1e-5), "mismatch vs reference (C=32)"

    # Test 3: force the pixel-blocked (large-map) path on the small shape to
    # exercise the second tiling mode and its tile-split heuristic.
    out3 = jax.block_until_ready(
        fully_conv_layer_forward(x, weight, bias, batch_block_threshold_bytes=0)
    )
    assert out3.shape == (N, 1, H, W), out3.shape
    assert jnp.allclose(out3, ref, atol=1e-5, rtol=1e-5), "mismatch vs reference (pixel path)"

    print("KERNEL_OK")
</pallas_src>

<mosaic_0001>
module attributes {stable_mosaic.version = 11 : i64} {
  func.func @_conv1x1_kernel(%arg0: i32, %arg1: memref<4x1xf32, #tpu.memory_space<vmem>>, %arg2: memref<1xf32, #tpu.memory_space<smem>>, %arg3: memref<2x4x256xf32, #tpu.memory_space<vmem>>, %arg4: memref<2x1x256xf32, #tpu.memory_space<vmem>>) attributes {dimension_semantics = [#tpu.dimension_semantics<parallel>], iteration_bounds = array<i64: 1>, scalar_prefetch = 0 : i64, scratch_operands = 0 : i64, tpu.core_type = #tpu.core_type<tc>, window_params = [{pipeline_mode = #tpu.pipeline_mode<synchronous>, transform_indices = @transform_0, window_bounds = array<i64: 4, 1>}, {transform_indices = @transform_1, window_bounds = array<i64: 1>}, {transform_indices = @transform_2, window_bounds = array<i64: 2, 4, 256>}, {transform_indices = @transform_3, window_bounds = array<i64: 2, 1, 256>}]} {
    %c0 = arith.constant 0 : index
    %c0_0 = arith.constant 0 : index
    %c0_1 = arith.constant 0 : index
    %0 = vector.load %arg3[%c0, %c0_0, %c0_1] : memref<2x4x256xf32, #tpu.memory_space<vmem>>, vector<2x4x256xf32>
    %c0_2 = arith.constant 0 : index
    %c0_3 = arith.constant 0 : index
    %1 = vector.load %arg1[%c0_2, %c0_3] : memref<4x1xf32, #tpu.memory_space<vmem>>, vector<4x1xf32>
    %2 = vector.shape_cast %1 : vector<4x1xf32> to vector<1x4x1xf32>
    %3 = vector.broadcast %2 : vector<1x4x1xf32> to vector<2x4x256xf32>
    %4 = arith.mulf %0, %3 : vector<2x4x256xf32>
    %cst = arith.constant dense<0.000000e+00> : vector<2x256xf32>
    %5 = vector.multi_reduction <add>, %4, %cst [1] : vector<2x4x256xf32> to vector<2x256xf32>
    %6 = vector.shape_cast %5 : vector<2x256xf32> to vector<2x1x256xf32>
    %c0_4 = arith.constant 0 : index
    %7 = memref.load %arg2[%c0_4] : memref<1xf32, #tpu.memory_space<smem>>
    %8 = vector.broadcast %7 : f32 to vector<2x1x256xf32>
    %9 = arith.addf %6, %8 : vector<2x1x256xf32>
    %c0_5 = arith.constant 0 : index
    %c0_6 = arith.constant 0 : index
    %c0_7 = arith.constant 0 : index
    %10 = vector.load %arg4[%c0_5, %c0_6, %c0_7] : memref<2x1x256xf32, #tpu.memory_space<vmem>>, vector<2x1x256xf32>
    tpu.vector_store %arg4[%c0_5, %c0_6, %c0_7], %9 {strides = array<i32>} : memref<2x1x256xf32, #tpu.memory_space<vmem>>, vector<2x1x256xf32>,
    return
  }
  func.func @transform_0(%arg0: i32) -> (i32, i32) {
    %c0_i32 = arith.constant 0 : i32
    %c0_i32_0 = arith.constant 0 : i32
    %c0_i32_1 = arith.constant 0 : i32
    return %c0_i32, %c0_i32_0 : i32, i32
  }
  func.func @transform_1(%arg0: i32) -> i32 {
    %c0_i32 = arith.constant 0 : i32
    %c0_i32_0 = arith.constant 0 : i32
    return %c0_i32 : i32
  }
  func.func @transform_2(%arg0: i32) -> (i32, i32, i32) {
    %c0_i32 = arith.constant 0 : i32
    %c0_i32_0 = arith.constant 0 : i32
    %c0_i32_1 = arith.constant 0 : i32
    return %arg0, %c0_i32, %c0_i32_0 : i32, i32, i32
  }
  func.func @transform_3(%arg0: i32) -> (i32, i32, i32) {
    %c0_i32 = arith.constant 0 : i32
    %c0_i32_0 = arith.constant 0 : i32
    %c0_i32_1 = arith.constant 0 : i32
    return %arg0, %c0_i32, %c0_i32_0 : i32, i32, i32
  }
}

</mosaic_0001>

<llo_original>
// kernel: tpu_custom_call.1
$region0: #{tpu_custom_call.1}
  #allocation0 [shape = 'u32[]', space=smem, size = 0x4, offset = 0x4, fixed_abs, tag = 'smem constant byte address 0x4 - core index']
  #allocation1 [shape = 'u32[144,128]{1,0:T(1,128)}', space=vmem, size = 0x12000, scoped, tag = 'internal scratch']
  #allocation2 [shape = 'f32[1]{0:T(128)S(6)}', space=smem, size = 0x200, scoped, tag = 'scoped memory for tpu_custom_call.1']
  %s0 = inlined_call_operand.vmem [shape: f32[4,1], index: 0, kind: input, shape index: {}]
  %s1 = inlined_call_operand.<no memory space> [shape: f32[1], index: 1, kind: input, shape index: {}]
  %s2 = inlined_call_operand.hbm [shape: f32[2,4,256], index: 2, kind: input, shape index: {}]
  %s3 = inlined_call_operand.hbm [shape: f32[2,1,256], index: 3, kind: output, shape index: {}]
  %s4 = sld [smem:[#allocation0]]
  $region26: #{tpu_custom_call.1} parent=0
    _
  %s6 = ssub.s32 1, %s4
  %s7 = scalar_select 0, %s6, %s4
  %8 = sst [smem:[#allocation2]] %s1
  $region1: #{tpu_custom_call.1} parent=0
    #allocation3 [shape = 'u8[8192]{0}', space=vmem, size = 0x2000, scoped, tag = 'input window, operand 2, single buffered']
    #allocation4 [shape = 's32[1]{0}', space=sflag, size = 0x4, scoped, tag = 'scoped memory for tpu_custom_call.1']
    #allocation5 [shape = 's32[1]{0}', space=sflag, size = 0x4, scoped, tag = 'scoped memory for tpu_custom_call.1']
    #allocation6 [shape = 'u8[2048]{0}', space=vmem, size = 0x800, scoped, tag = 'output window, operand 0, single buffered']
    %9 = vsyncpa [#allocation4], 0
    %10 = vsyncpa [#allocation5], 0
    // Predicated region
    $region2: #{tpu_custom_call.1} parent=1 // pred_check
      _
    $region3: #{tpu_custom_call.1} parent=1 // pred_check_branch
      %12 = sbr.rel (0) target = $region5
    $region4: #{tpu_custom_call.1} parent=1 // pred_region
      _
    $region5: #{tpu_custom_call.1} parent=1 // pred_fallthru
      _
    // Predicated region
    $region6: #{tpu_custom_call.1} parent=1 // pred_check
      _
    $region7: #{tpu_custom_call.1} parent=1 // pred_check_branch
      %14 = sbr.rel (0) target = $region9
    $region8: #{tpu_custom_call.1} parent=1 // pred_region
      _
    $region9: #{tpu_custom_call.1} parent=1 // pred_fallthru
      _
    // Predicated region
    $region10: #{tpu_custom_call.1} parent=1 // pred_check
      _
    $region11: #{tpu_custom_call.1} parent=1 // pred_check_branch
      %16 = sbr.rel (0) target = $region13
    $region12: #{tpu_custom_call.1} parent=1 // pred_region
      %s18 = ssub.s32 256, 256
      %19 = vsyncadd [#allocation4], %s18
      %s20 = sshll.u32 [#allocation3], 4
      %s21 = int_to_ptr.vmem [resolvable:$true] %s20
      %26 = dma.hbm_to_vmem [thread:$0]  %s2, 256, %s21, [#allocation4], 128, 128, 8
    $region13: #{tpu_custom_call.1} parent=1 // pred_fallthru
      _
    // Predicated region
    $region14: #{tpu_custom_call.1} parent=1 // pred_check
      _
    $region15: #{tpu_custom_call.1} parent=1 // pred_check_branch
      %28 = sbr.rel (0) target = $region17
    $region16: #{tpu_custom_call.1} parent=1 // pred_region
      %29 = dma.done [#allocation4], 256
    $region17: #{tpu_custom_call.1} parent=1 // pred_fallthru
      _
    %v30 = vld [vmem:[#allocation3] sm:$0xff]
    %v31 = vld [vmem:[#allocation3 + $0x8] sm:$0xff]
    %v32 = vld [vmem:[%s0] sm:$0xf]
    %34 = vset.pattern.permute.xlu0 0
    %35 = vperm.xlu0 %34, %v32
    %v36 = vpop.permute.xlu0 %35
    %v38 = vunpack.c.l.s4 839922192
    %v39 = vunpack.c.0.s8 %v38
    %v40 = vlaneseq
    %v41 = vshrl.u32 %v40, 7
    %v42 = vsub.s32 %v39, %v41
    %v43 = vrot.slane %v36, %v42
    %v45 = vmul.f32 %v30, %v43
    %v46 = vmul.f32 %v31, %v43
    %v49 = vcombine.high %v45, %v45
    %v50 = vcombine.high %v46, %v46
    %vm53 = vcmask 1043456
    %v54 = vsel %vm53, %v45, 0.0
    %v55 = vrot.slane %v54, 4
    %v56 = vadd.f32 %v54, %v55
    %v57 = vrot.slane %v56, 2
    %v58 = vadd.f32 %v56, %v57
    %v59 = vrot.slane %v58, 1
    %v60 = vadd.f32 %v58, %v59
    %v61 = vsel %vm53, %v49, 0.0
    %v62 = vrot.slane %v61, 4
    %v63 = vadd.f32 %v61, %v62
    %v64 = vrot.slane %v63, 2
    %v65 = vadd.f32 %v63, %v64
    %v66 = vrot.slane %v65, 1
    %v67 = vadd.f32 %v65, %v66
    %v68 = vsel %vm53, %v46, 0.0
    %v69 = vrot.slane %v68, 4
    %v70 = vadd.f32 %v68, %v69
    %v71 = vrot.slane %v70, 2
    %v72 = vadd.f32 %v70, %v71
    %v73 = vrot.slane %v72, 1
    %v74 = vadd.f32 %v72, %v73
    %v75 = vsel %vm53, %v50, 0.0
    %v76 = vrot.slane %v75, 4
    %v77 = vadd.f32 %v75, %v76
    %v78 = vrot.slane %v77, 2
    %v79 = vadd.f32 %v77, %v78
    %v80 = vrot.slane %v79, 1
    %v81 = vadd.f32 %v79, %v80
    %s82 = sld [smem:[#allocation2]]
    %v83 = vstv %s82
    %v84 = vadd.f32 %v60, %v83
    %v85 = vadd.f32 %v67, %v83
    %v86 = vadd.f32 %v74, %v83
    %v87 = vadd.f32 %v81, %v83
    %v92 = vcombine.low %v84, %v85
    %v94 = vunpack.c.l.s4 1966171168
    %v95 = vunpack.c.0.s8 %v94
    %v96 = vlaneseq
    %v97 = vshrl.u32 %v96, 7
    %v98 = vsub.s32 %v95, %v97
    %v99 = vrot.slane %v92, %v98
    %v101 = vunpack.c.l.s4 1966171168
    %v102 = vunpack.c.0.s8 %v101
    %v103 = vlaneseq
    %v104 = vshrl.u32 %v103, 7
    %v105 = vsub.s32 %v102, %v104
    %v106 = vrot.slane %v99, %v105
    %v107 = vcombine.low %v86, %v87
    %v109 = vunpack.c.l.s4 1966171168
    %v110 = vunpack.c.0.s8 %v109
    %v111 = vlaneseq
    %v112 = vshrl.u32 %v111, 7
    %v113 = vsub.s32 %v110, %v112
    %v114 = vrot.slane %v107, %v113
    %v116 = vunpack.c.l.s4 1966171168
    %v117 = vunpack.c.0.s8 %v116
    %v118 = vlaneseq
    %v119 = vshrl.u32 %v118, 7
    %v120 = vsub.s32 %v117, %v119
    %v121 = vrot.slane %v114, %v120
    %v124 = vlaneseq
    %vm125 = vcmp.ge.s32.totalorder %v124, 0
    %vm126 = vcmp.lt.s32.totalorder %v124, 256
    %vm127 = vmand %vm125, %vm126
    %128 = vst.msk [vmem:[#allocation6] sm:$0x3] %vm127, %v106
    %129 = vst.msk [vmem:[#allocation6 + $0x2] sm:$0x3] %vm127, %v121
    // Predicated region
    $region18: #{tpu_custom_call.1} parent=1 // pred_check
      _
    $region19: #{tpu_custom_call.1} parent=1 // pred_check_branch
      %131 = sbr.rel (0) target = $region21
    $region20: #{tpu_custom_call.1} parent=1 // pred_region
      %s133 = ssub.s32 64, 64
      %134 = vsyncadd [#allocation5], %s133
      %s135 = sshll.u32 [#allocation6], 4
      %s136 = int_to_ptr.vmem [resolvable:$true] %s135
      %141 = dma.vmem_to_hbm [thread:$0]  %s136, 64, %s3, [#allocation5], 32, 32, 2
    $region21: #{tpu_custom_call.1} parent=1 // pred_fallthru
      _
    // Predicated region
    $region22: #{tpu_custom_call.1} parent=1 // pred_check
      _
    $region23: #{tpu_custom_call.1} parent=1 // pred_check_branch
      %143 = sbr.rel (0) target = $region25
    $region24: #{tpu_custom_call.1} parent=1 // pred_region
      %144 = dma.done [#allocation5], 64
    $region25: #{tpu_custom_call.1} parent=1 // pred_fallthru
      _
    %145 = vsyncpa [#allocation4], 1
    %146 = vsyncpa [#allocation5], 1

</llo_original>
